<compile_context>
chip_gen: v7x
topology: tpu7x:2x2x1
jax: 0.10.0
libtpu: 0.0.40
codegen_flags: <defaults>
</compile_context>

<pallas_src>
import jax
import jax.numpy as jnp
from jax.experimental import pallas as pl
from jax.experimental.pallas import tpu as pltpu


def _round_up(x, m):
    return (x + m - 1) // m * m


_HAS_BUFFERED = hasattr(pl, "Buffered")  # feature check, not exception swallowing


# ----------------------------- Pallas kernel --------------------------------


def _proj_kernel(x_ref, w_ref, b_ref, o_ref):
    # x_ref: (tm, C_pad) token rows, w_ref: (C_pad, E_pad), b_ref: (1, E_pad),
    # o_ref: (tm, E_pad). MXU matmul with f32 accumulation, bias add, cast, store.
    acc = jnp.dot(x_ref[...], w_ref[...], preferred_element_type=jnp.float32)
    o_ref[...] = (acc + b_ref[...].astype(jnp.float32)).astype(o_ref.dtype)


def _vmem_capacity_bytes():
    # Device-aware cap: 128 MiB on v5e/v6e, 64 MiB per TensorCore on v7x.
    try:
        return int(pltpu.get_tpu_info().vmem_capacity_bytes)
    except Exception:
        # Hardware introspection only (never masks kernel/lowering errors);
        # fall back to the most conservative real part (v7x, 64 MiB).
        return 64 << 20


def _make_proj_call(M, C_pad, E_pad, tm, in_dtype, w_dtype, out_dtype):
    in_bytes = jnp.dtype(in_dtype).itemsize
    w_bytes = jnp.dtype(w_dtype).itemsize
    out_bytes = jnp.dtype(out_dtype).itemsize

    if _HAS_BUFFERED:
        # Weight/bias are constant across the grid: keep them resident and
        # single-buffered so they don't burn 2x VMEM at real ViT sizes.
        w_spec = pl.BlockSpec((C_pad, E_pad), lambda i: (0, 0),
                              pipeline_mode=pl.Buffered(1))
        b_spec = pl.BlockSpec((1, E_pad), lambda i: (0, 0),
                              pipeline_mode=pl.Buffered(1))
        n_w_buf = 1
    else:
        w_spec = pl.BlockSpec((C_pad, E_pad), lambda i: (0, 0))
        b_spec = pl.BlockSpec((1, E_pad), lambda i: (0, 0))
        n_w_buf = 2

    # VMEM budget: resident weight/bias + double-buffered x/out row tiles + f32 epilogue.
    vmem_needed = (
        n_w_buf * (C_pad * E_pad + E_pad) * w_bytes
        + 2 * tm * C_pad * in_bytes
        + 2 * tm * E_pad * out_bytes
        + tm * E_pad * 4
    )
    cap = _vmem_capacity_bytes()
    vmem_limit = max(32 << 20,
                     min(int(vmem_needed * 1.5) + (4 << 20), cap - (8 << 20)))

    # Real (unpadded) row count, no transpose/pad copies — just what the kernel touches.
    cost = pl.CostEstimate(
        flops=2 * M * C_pad * E_pad,
        transcendentals=0,
        bytes_accessed=(M * C_pad * in_bytes
                        + (C_pad * E_pad + E_pad) * w_bytes
                        + M * E_pad * out_bytes),
    )

    return pl.pallas_call(
        _proj_kernel,
        out_shape=jax.ShapeDtypeStruct((M, E_pad), out_dtype),
        grid_spec=pltpu.PrefetchScalarGridSpec(
            num_scalar_prefetch=0,
            grid=(pl.cdiv(M, tm),),   # partial last row-block handled (masked) by Pallas
            in_specs=[
                pl.BlockSpec((tm, C_pad), lambda i: (i, 0)),  # token-row tile
                w_spec,                                        # proj weight (resident)
                b_spec,                                        # proj bias (resident)
            ],
            out_specs=pl.BlockSpec((tm, E_pad), lambda i: (i, 0)),
        ),
        compiler_params=pltpu.CompilerParams(
            dimension_semantics=("parallel",),
            vmem_limit_bytes=vmem_limit,
        ),
        cost_estimate=cost,
    )


# ------------------------------- wrapper -------------------------------------


def init_hybrid_embed(proj_w, proj_b, *, compute_dtype=jnp.bfloat16):
    """One-time weight prep for the projection.

    proj_w: (C_feat, embed_dim)  Linear weight, stored transposed vs. PyTorch.
    proj_b: (embed_dim,)
    Pads C/E up to multiples of 128 (dense lane layout) and casts to the compute
    dtype once at init, so no per-call weight copy hits HBM.
    """
    C, E = proj_w.shape
    C_pad = _round_up(C, 128)
    E_pad = _round_up(E, 128)
    w = proj_w.astype(compute_dtype)
    b = proj_b.reshape(1, E).astype(compute_dtype)
    if (C_pad, E_pad) != (C, E):
        w = jnp.pad(w, ((0, C_pad - C), (0, E_pad - E)))
    if E_pad != E:
        b = jnp.pad(b, ((0, 0), (0, E_pad - E)))
    return {"w": w, "b": b, "C": C, "E": E, "compute_dtype": compute_dtype}


def hybrid_embed_forward(params, feat_nhwc, *, tm=512, out_dtype=None):
    """HybridEmbed forward minus the CNN backbone.

    feat_nhwc: (B, Hf, Wf, C) channels-last backbone feature map. NHWC makes
      PyTorch's flatten(2).transpose(1,2) a free reshape (no HBM transpose).
      C may equal the true feature_dim or already be padded to a multiple of 128
      (fold the channel pad into the backbone to avoid an activation pad copy).
    Returns (B, Hf*Wf, embed_dim) in feat.dtype (or `out_dtype` if given).
    """
    w, b = params["w"], params["b"]
    C, E = params["C"], params["E"]
    compute_dtype = params["compute_dtype"]
    C_pad, E_pad = w.shape

    B, Hf, Wf, Cf = feat_nhwc.shape
    if Cf not in (C, C_pad):
        raise ValueError(f"feature channels {Cf} must be {C} or padded {C_pad}")
    M = B * Hf * Wf
    out_dtype = feat_nhwc.dtype if out_dtype is None else out_dtype

    # flatten(2).transpose(1,2) == free reshape in NHWC: (B,H,W,C) -> (B*H*W, C)
    x2d = feat_nhwc.reshape(M, Cf).astype(compute_dtype)
    if Cf != C_pad:
        # Extra HBM copy; prefer emitting padded channels from the backbone instead.
        x2d = jnp.pad(x2d, ((0, 0), (0, C_pad - Cf)))

    # Row tiling: sublane-aligned (16 for 2-byte dtypes, 8 for 4-byte). Large tiles
    # reach the HBM-roofline knee, but keep >= 2 "parallel" grid steps so both
    # TensorCores on v7x get work. No row padding — Pallas masks the tail block.
    sub = 16 if jnp.dtype(compute_dtype).itemsize == 2 else 8
    tm = max(sub, _round_up(int(tm), sub))
    if M > sub and pl.cdiv(M, tm) < 2:
        tm = max(sub, _round_up(pl.cdiv(M, 2), sub))
    tm = min(tm, _round_up(M, sub))

    out2d = _make_proj_call(M, C_pad, E_pad, tm,
                            x2d.dtype, w.dtype, out_dtype)(x2d, w, b)

    if E_pad != E:
        out2d = out2d[:, :E]
    return out2d.reshape(B, Hf * Wf, E)


# ----------------------- stand-in CNN backbone (plain JAX) -------------------


def _toy_backbone(x_nhwc, conv_w_hwio, stride=4):
    # TODO(synk): arbitrary CNN backbone not translated to Pallas; plain JAX/XLA
    # stand-in, kept NHWC so the downstream flatten is layout-free.
    y = jax.lax.conv_general_dilated(
        x_nhwc, conv_w_hwio, window_strides=(stride, stride), padding="SAME",
        dimension_numbers=("NHWC", "HWIO", "NHWC"))
    return jax.nn.relu(y)


# ----------------------------------- demo ------------------------------------


if __name__ == "__main__":
    key = jax.random.PRNGKey(0)
    k_img, k_conv, k_w, k_b = jax.random.split(key, 4)

    # Small HybridEmbed-like config: img 56x56, in_chans=3, backbone stride 4 ->
    # 14x14 feature map with feature_dim=96, projected to embed_dim=256.
    batch, in_chans, img = 2, 3, 56
    feature_dim, embed_dim = 96, 256
    stride, ksz = 4, 7

    x_img = jax.random.normal(k_img, (batch, img, img, in_chans), jnp.float32)
    conv_w = jax.random.normal(k_conv, (ksz, ksz, in_chans, feature_dim), jnp.float32) * 0.05
    proj_w = jax.random.normal(k_w, (feature_dim, embed_dim), jnp.float32) * 0.02
    proj_b = jax.random.normal(k_b, (embed_dim,), jnp.float32) * 0.02

    # Fold the 96 -> 128 channel pad into the backbone: extra conv filters are zero,
    # so padded feature channels are exactly zero and the projection is unchanged
    # (the matching padded weight rows are also zero). Avoids an activation pad copy.
    C_pad = _round_up(feature_dim, 128)
    conv_w_padded = jnp.pad(conv_w, ((0, 0), (0, 0), (0, 0), (0, C_pad - feature_dim)))

    feat = _toy_backbone(x_img, conv_w_padded, stride=stride)   # (2, 14, 14, 128) NHWC
    B, Hf, Wf, _ = feat.shape

    # Default path: bf16 compute, f32 accumulation, f32 output. M = 2*196 = 392 rows,
    # tm auto-shrinks from 512 to keep >= 2 parallel grid steps (partial tail block).
    params_bf16 = init_hybrid_embed(proj_w, proj_b)              # compute_dtype=bf16
    out = jax.block_until_ready(hybrid_embed_forward(params_bf16, feat))

    # Pure-JAX reference for flatten + transpose + Linear (unpadded channels).
    tokens = feat[..., :feature_dim].reshape(B, Hf * Wf, feature_dim)
    ref = jnp.einsum("bnc,ce->bne", tokens, proj_w,
                     precision=jax.lax.Precision.HIGHEST) + proj_b

    assert out.shape == (B, Hf * Wf, embed_dim)
    assert jnp.allclose(out, ref, atol=1e-2, rtol=1e-2)

    # f32 compute path, tighter tolerance.
    params_f32 = init_hybrid_embed(proj_w, proj_b, compute_dtype=jnp.float32)
    out_f32 = jax.block_until_ready(hybrid_embed_forward(params_f32, feat, tm=256))
    assert out_f32.shape == (B, Hf * Wf, embed_dim)
    assert jnp.allclose(out_f32, ref, atol=2e-3, rtol=2e-3)

    print("KERNEL_OK")
</pallas_src>

<mosaic_0001>
module attributes {stable_mosaic.version = 11 : i64} {
  func.func @_proj_kernel(%arg0: i32, %arg1: memref<208x128xbf16, #tpu.memory_space<vmem>>, %arg2: memref<128x256xbf16, #tpu.memory_space<vmem>>, %arg3: memref<1x256xbf16, #tpu.memory_space<vmem>>, %arg4: memref<208x256xf32, #tpu.memory_space<vmem>>) attributes {dimension_semantics = [#tpu.dimension_semantics<parallel>], iteration_bounds = array<i64: 2>, scalar_prefetch = 0 : i64, scratch_operands = 0 : i64, tpu.core_type = #tpu.core_type<tc>, window_params = [{transform_indices = @transform_0, window_bounds = array<i64: 208, 128>}, {pipeline_mode = #tpu.pipeline_mode<synchronous>, transform_indices = @transform_1, window_bounds = array<i64: 128, 256>}, {pipeline_mode = #tpu.pipeline_mode<synchronous>, transform_indices = @transform_2, window_bounds = array<i64: 1, 256>}, {transform_indices = @transform_3, window_bounds = array<i64: 208, 256>}]} {
    %c0 = arith.constant 0 : index
    %c0_0 = arith.constant 0 : index
    %0 = vector.load %arg1[%c0, %c0_0] : memref<208x128xbf16, #tpu.memory_space<vmem>>, vector<208x128xbf16>
    %c0_1 = arith.constant 0 : index
    %c0_2 = arith.constant 0 : index
    %1 = vector.load %arg2[%c0_1, %c0_2] : memref<128x256xbf16, #tpu.memory_space<vmem>>, vector<128x256xbf16>
    %cst = arith.constant dense<0.000000e+00> : vector<208x256xf32>
    %2 = tpu.matmul %0, %1, %cst {dimension_numbers = #tpu.dot_dimension_numbers<[1], [0], [0], [1], [0, 0, 1, 1], [], []>} : vector<208x128xbf16>, vector<128x256xbf16>, vector<208x256xf32> -> vector<208x256xf32>
    %c0_3 = arith.constant 0 : index
    %c0_4 = arith.constant 0 : index
    %3 = vector.load %arg3[%c0_3, %c0_4] : memref<1x256xbf16, #tpu.memory_space<vmem>>, vector<1x256xbf16>
    %4 = arith.extf %3 : vector<1x256xbf16> to vector<1x256xf32>
    %5 = vector.broadcast %4 : vector<1x256xf32> to vector<208x256xf32>
    %6 = arith.addf %2, %5 : vector<208x256xf32>
    %c0_5 = arith.constant 0 : index
    %c0_6 = arith.constant 0 : index
    %7 = vector.load %arg4[%c0_5, %c0_6] : memref<208x256xf32, #tpu.memory_space<vmem>>, vector<208x256xf32>
    tpu.vector_store %arg4[%c0_5, %c0_6], %6 {strides = array<i32>} : memref<208x256xf32, #tpu.memory_space<vmem>>, vector<208x256xf32>,
    return
  }
  func.func @transform_0(%arg0: i32) -> (i32, i32) {
    %c0_i32 = arith.constant 0 : i32
    %c0_i32_0 = arith.constant 0 : i32
    return %arg0, %c0_i32 : i32, i32
  }
  func.func @transform_1(%arg0: i32) -> (i32, i32) {
    %c0_i32 = arith.constant 0 : i32
    %c0_i32_0 = arith.constant 0 : i32
    %c0_i32_1 = arith.constant 0 : i32
    return %c0_i32, %c0_i32_0 : i32, i32
  }
  func.func @transform_2(%arg0: i32) -> (i32, i32) {
    %c0_i32 = arith.constant 0 : i32
    %c0_i32_0 = arith.constant 0 : i32
    %c0_i32_1 = arith.constant 0 : i32
    return %c0_i32, %c0_i32_0 : i32, i32
  }
  func.func @transform_3(%arg0: i32) -> (i32, i32) {
    %c0_i32 = arith.constant 0 : i32
    %c0_i32_0 = arith.constant 0 : i32
    return %arg0, %c0_i32 : i32, i32
  }
}

</mosaic_0001>

<llo_original>
// kernel: tpu_custom_call.1
$region0: #{tpu_custom_call.1}
  #allocation0 [shape = 'u32[]', space=smem, size = 0x4, offset = 0x4, fixed_abs, tag = 'smem constant byte address 0x4 - core index']
  #allocation1 [shape = 'u32[144,128]{1,0:T(1,128)}', space=vmem, size = 0x12000, scoped, tag = 'internal scratch']
  %s0 = inlined_call_operand.hbm [shape: bf16[392,128], index: 0, kind: input, shape index: {}]
  %s1 = inlined_call_operand.hbm [shape: bf16[128,256], index: 1, kind: input, shape index: {}]
  %s2 = inlined_call_operand.vmem [shape: bf16[1,256], index: 2, kind: input, shape index: {}]
  %s3 = inlined_call_operand.hbm [shape: f32[392,256], index: 3, kind: output, shape index: {}]
  %s4 = sld [smem:[#allocation0]]
  $region53: #{tpu_custom_call.1} parent=0
    _
  %s6 = ssub.s32 1, %s4
  %s7 = scalar_select 0, %s6, %s4
  $region1: #{tpu_custom_call.1} parent=0
    #allocation2 [shape = 'u8[106496]{0}', space=vmem, size = 0x1a000, scoped, tag = 'input window, operand 0']
    #allocation3 [shape = 's32[2]{0}', space=sflag, size = 0x8, scoped, tag = 'scoped memory for tpu_custom_call.1']
    #allocation4 [shape = 's32[2]{0}', space=sflag, size = 0x8, scoped, tag = 'scoped memory for tpu_custom_call.1']
    #allocation5 [shape = 'u8[65536]{0}', space=vmem, size = 0x10000, scoped, tag = 'input window, operand 1, single buffered']
    #allocation6 [shape = 's32[1]{0}', space=sflag, size = 0x4, scoped, tag = 'scoped memory for tpu_custom_call.1']
    #allocation7 [shape = 'u8[425984]{0}', space=vmem, size = 0x68000, scoped, tag = 'output window, operand 0']
    %8 = vsyncpa [#allocation3], 0
    %s9 = scalar_lea.sflag [#allocation3], 1
    %10 = vsyncpa %s9, 0
    %11 = vsyncpa [#allocation6], 0
    %12 = vsyncpa [#allocation4], 0
    %s13 = scalar_lea.sflag [#allocation4], 1
    %14 = vsyncpa %s13, 0
    loop: start=0, step=1, limit=4
    $region2: #{tpu_custom_call.1} parent=1 // loop_pre_header
      _
    $region3: #{tpu_custom_call.1} parent=1 // loop_header
      %s16 = sphi 0, %s20
      %p17 = scmp.ge.s32.totalorder %s16, 4
      %s26 = sphi 0, %s28
      %s29 = sphi 0, %s26
      %s30 = sphi 0, %s29
      %s46 = sphi 0, %s30
      %s50 = sphi 0, %s50
      %s52 = sphi 0, %s50
      %s53 = sphi 0, %s52
      %s67 = sphi 0, %s53
      %s71 = sphi 0, %s71
      %s73 = sphi 0, %s71
      %s74 = sphi 0, %s73
      %s88 = sphi 0, %s74
      %s94 = sphi 0, %s96
      %s97 = sphi 0, %s94
      %s98 = sphi 0, %s97
      %s114 = sphi 0, %s98
    $region4: #{tpu_custom_call.1} parent=1 // loop_header_branch
      %19 = sbr.rel (%p17) target = $region8
    $region5: #{tpu_custom_call.1} parent=1 // loop_body
      %s21 = ssub.s32 %s16, 1
      %s22 = ssub.s32 %s16, 2
      %s23 = sadd.s32 %s16, 1
      %s24 = ssub.s32 %s16, %s23
      %p25 = scmp.eq.s32.totalorder %s24, 0
      %s27 = sadd.s32 %s26, 1
      %s28 = scalar_select %p25, %s26, %s27
      %p31 = pneg %p25
      %p32 = scmp.eq.s32.totalorder %s16, 1
      %p33 = por %p31, %p32
      %p34 = scmp.ne.s32.totalorder %s26, %s29
      %p35 = scmp.eq.s32.totalorder %s16, 0
      %p36 = por %p34, %p35
      %p37 = scmp.ne.s32.totalorder %s26, %s29
      %p38 = scmp.eq.s32.totalorder %s21, 1
      %p39 = por %p37, %p38
      %p40 = scmp.ne.s32.totalorder %s29, %s30
      %p41 = scmp.eq.s32.totalorder %s21, 0
      %p42 = por %p40, %p41
      %p43 = scmp.ne.s32.totalorder %s29, %s30
      %p44 = scmp.eq.s32.totalorder %s22, 1
      %p45 = por %p43, %p44
      %p47 = scmp.ne.s32.totalorder %s30, %s46
      %p48 = scmp.eq.s32.totalorder %s22, 0
      %p49 = por %p47, %p48
      %s51 = sadd.s32 %s50, 1
      %p54 = scmp.eq.s32.totalorder %s16, 1
      %p55 = scmp.ne.s32.totalorder %s50, %s52
      %p56 = scmp.eq.s32.totalorder %s16, 0
      %p57 = por %p55, %p56
      %p58 = scmp.ne.s32.totalorder %s50, %s52
      %p59 = scmp.eq.s32.totalorder %s21, 1
      %p60 = por %p58, %p59
      %p61 = scmp.ne.s32.totalorder %s52, %s53
      %p62 = scmp.eq.s32.totalorder %s21, 0
      %p63 = por %p61, %p62
      %p64 = scmp.ne.s32.totalorder %s52, %s53
      %p65 = scmp.eq.s32.totalorder %s22, 1
      %p66 = por %p64, %p65
      %p68 = scmp.ne.s32.totalorder %s53, %s67
      %p69 = scmp.eq.s32.totalorder %s22, 0
      %p70 = por %p68, %p69
      %s72 = sadd.s32 %s71, 1
      %p75 = scmp.eq.s32.totalorder %s16, 1
      %p76 = scmp.ne.s32.totalorder %s71, %s73
      %p77 = scmp.eq.s32.totalorder %s16, 0
      %p78 = por %p76, %p77
      %p79 = scmp.ne.s32.totalorder %s71, %s73
      %p80 = scmp.eq.s32.totalorder %s21, 1
      %p81 = por %p79, %p80
      %p82 = scmp.ne.s32.totalorder %s73, %s74
      %p83 = scmp.eq.s32.totalorder %s21, 0
      %p84 = por %p82, %p83
      %p85 = scmp.ne.s32.totalorder %s73, %s74
      %p86 = scmp.eq.s32.totalorder %s22, 1
      %p87 = por %p85, %p86
      %p89 = scmp.ne.s32.totalorder %s74, %s88
      %p90 = scmp.eq.s32.totalorder %s22, 0
      %p91 = por %p89, %p90
      %s92 = ssub.s32 %s16, %s23
      %p93 = scmp.eq.s32.totalorder %s92, 0
      %s95 = sadd.s32 %s94, 1
      %s96 = scalar_select %p93, %s94, %s95
      %p99 = pneg %p93
      %p100 = scmp.eq.s32.totalorder %s16, 1
      %p101 = por %p99, %p100
      %p102 = scmp.ne.s32.totalorder %s94, %s97
      %p103 = scmp.eq.s32.totalorder %s16, 0
      %p104 = por %p102, %p103
      %p105 = scmp.ne.s32.totalorder %s94, %s97
      %p106 = scmp.eq.s32.totalorder %s21, 1
      %p107 = por %p105, %p106
      %p108 = scmp.ne.s32.totalorder %s97, %s98
      %p109 = scmp.eq.s32.totalorder %s21, 0
      %p110 = por %p108, %p109
      %p111 = scmp.ne.s32.totalorder %s97, %s98
      %p112 = scmp.eq.s32.totalorder %s22, 1
      %p113 = por %p111, %p112
      %p115 = scmp.ne.s32.totalorder %s98, %s114
      %p116 = scmp.eq.s32.totalorder %s22, 0
      %p117 = por %p115, %p116
      %p118 = scmp.le.s32.totalorder 1, %s16
      %p119 = scmp.lt.s32.totalorder %s16, 3
      %p120 = pnand %p118, %p119
      %p121 = pneg %p120
      // Predicated region
      $region9: #{tpu_custom_call.1} parent=5 // pred_check
        _
      $region10: #{tpu_custom_call.1} parent=5 // pred_check_branch
        %123 = sbr.rel (%p120) target = $region12
      $region11: #{tpu_custom_call.1} parent=5 // pred_region
        %s124 = ssub.s32 %s16, 1
        // Predicated region
        $region13: #{tpu_custom_call.1} parent=11 // pred_check
          %p125 = pneg %p63
        $region14: #{tpu_custom_call.1} parent=11 // pred_check_branch
          %127 = sbr.rel (%p125) target = $region16
        $region15: #{tpu_custom_call.1} parent=11 // pred_region
          %s129 = ssub.s32 2048, 2048
          %130 = vsyncadd [#allocation6], %s129
          %s131 = sshll.u32 [#allocation5], 4
          %s132 = int_to_ptr.vmem [resolvable:$true] %s131
          %137 = dma.hbm_to_vmem [thread:$0]  %s1, 2048, %s132, [#allocation6], 128, 128, 8
        $region16: #{tpu_custom_call.1} parent=11 // pred_fallthru
          _
        // Predicated region
        $region17: #{tpu_custom_call.1} parent=11 // pred_check
          %p138 = pneg %p84
        $region18: #{tpu_custom_call.1} parent=11 // pred_check_branch
          %140 = sbr.rel (%p138) target = $region20
        $region19: #{tpu_custom_call.1} parent=11 // pred_region
          _
        $region20: #{tpu_custom_call.1} parent=11 // pred_fallthru
          _
      $region12: #{tpu_custom_call.1} parent=5 // pred_fallthru
        _
      %p141 = scmp.lt.s32.totalorder %s16, 2
      // Predicated region
      $region21: #{tpu_custom_call.1} parent=5 // pred_check
        %p142 = pneg %p141
      $region22: #{tpu_custom_call.1} parent=5 // pred_check_branch
        %144 = sbr.rel (%p142) target = $region24
      $region23: #{tpu_custom_call.1} parent=5 // pred_region
        // Predicated region
        $region25: #{tpu_custom_call.1} parent=23 // pred_check
          %p145 = pneg %p36
        $region26: #{tpu_custom_call.1} parent=23 // pred_check_branch
          %147 = sbr.rel (%p145) target = $region28
        $region27: #{tpu_custom_call.1} parent=23 // pred_region
          %s148 = sand.u32 %s26, 1
          %s149 = scalar_lea.sflag [#allocation3], %s148
          %s150 = sand.u32 %s26, 1
          %s151 = smul.addr %s150, 104
          %s152 = scalar_lea.vmem [#allocation2], %s151
          %s153 = smul.u32 26, %s16
          %s154 = ssub.s32 49, %s153
          %p155 = scmp.lt.s32.totalorder %s154, 26
          %s156 = scalar_select %p155, %s154, 26
          %s157 = smul.u32 64, %s156
          %s159 = ssub.s32 1664, %s157
          %160 = vsyncadd %s149, %s159
          %p161 = scmp.ne.s32.totalorder 0, %s157
          %s162 = smul.addr %s153, 64
          %s163 = scalar_lea.hbm %s0, %s162
          %s164 = smul.u32 4, %s156
          %s165 = sshll.u32 %s152, 4
          %s166 = int_to_ptr.vmem [resolvable:$true] %s165
          %s167 = sshll.u32 %s164, 4
          %171 = dma.hbm_to_vmem [thread:$0]  (%p161), %s163, %s167, %s166, %s149, 64, 64, 4
        $region28: #{tpu_custom_call.1} parent=23 // pred_fallthru
          _
      $region24: #{tpu_custom_call.1} parent=5 // pred_fallthru
        _
      %p172 = scmp.le.s32.totalorder 1, %s16
      %p173 = scmp.lt.s32.totalorder %s16, 3
      %p174 = pnand %p172, %p173
      %p175 = pneg %p174
      // Predicated region
      $region29: #{tpu_custom_call.1} parent=5 // pred_check
        _
      $region30: #{tpu_custom_call.1} parent=5 // pred_check_branch
        %177 = sbr.rel (%p174) target = $region32
      $region31: #{tpu_custom_call.1} parent=5 // pred_region
        %s178 = ssub.s32 %s16, 1
        %s179 = sand.u32 %s29, 1
        %s180 = scalar_lea.sflag [#allocation3], %s179
        %s181 = sand.u32 %s29, 1
        %s182 = smul.addr %s181, 104
        %s183 = scalar_lea.vmem [#allocation2], %s182
        // Predicated region
        $region33: #{tpu_custom_call.1} parent=31 // pred_check
          %p184 = pneg %p42
        $region34: #{tpu_custom_call.1} parent=31 // pred_check_branch
          %186 = sbr.rel (%p184) target = $region36
        $region35: #{tpu_custom_call.1} parent=31 // pred_region
          %187 = dma.done %s180, 1664
        $region36: #{tpu_custom_call.1} parent=31 // pred_fallthru
          _
        // Predicated region
        $region37: #{tpu_custom_call.1} parent=31 // pred_check
          %p188 = pneg %p63
        $region38: #{tpu_custom_call.1} parent=31 // pred_check_branch
          %190 = sbr.rel (%p188) target = $region40
        $region39: #{tpu_custom_call.1} parent=31 // pred_region
          %191 = dma.done [#allocation6], 2048
        $region40: #{tpu_custom_call.1} parent=31 // pred_fallthru
          _
        %s192 = sand.u32 %s29, 1
        %s193 = scalar_lea.sflag [#allocation3], %s192
        %s194 = sand.u32 %s29, 1
        %s195 = smul.addr %s194, 104
        %s196 = scalar_lea.vmem [#allocation2], %s195
        %p197 = pneg %p42
        %p198 = pneg %p39
        %p199 = pneg %p63
        %p200 = pneg %p60
        %p201 = pneg %p84
        %p202 = pneg %p81
        %p203 = pneg %p110
        %p204 = pneg %p107
        %s205 = sand.u32 %s97, 1
        %s206 = scalar_lea.sflag [#allocation4], %s205
        %s207 = sand.u32 %s97, 1
        %s208 = smul.addr %s207, 416
        %s209 = scalar_lea.vmem [#allocation7], %s208
        %s210 = smul.u32 26, %s21
        %s211 = ssub.s32 49, %s210
        %p212 = scmp.lt.s32.totalorder %s211, 26
        %s213 = scalar_select %p212, %s211, 26
        %s214 = smul.u32 64, %s213
        %s215 = smul.u32 26, %s21
        %s216 = ssub.s32 49, %s215
        %p217 = scmp.lt.s32.totalorder %s216, 26
        %s218 = scalar_select %p217, %s216, 26
        %s219 = smul.u32 128, %s218
        %s220 = smul.u32 %s219, 2
        %v222 = vld [vmem:[%s183] sm:$0xf]
        %v223 = vld [vmem:[%s183 + $0x4] sm:$0xf]
        %v224 = vld [vmem:[%s183 + $0x8] sm:$0xf]
        %v225 = vld [vmem:[%s183 + $0xc] sm:$0xf]
        %v226 = vld [vmem:[%s183 + $0x10] sm:$0xf]
        %v227 = vld [vmem:[%s183 + $0x14] sm:$0xf]
        %v228 = vld [vmem:[%s183 + $0x18] sm:$0xf]
        %v229 = vld [vmem:[%s183 + $0x1c] sm:$0xf]
        %v230 = vld [vmem:[%s183 + $0x20] sm:$0xf]
        %v231 = vld [vmem:[%s183 + $0x24] sm:$0xf]
        %v232 = vld [vmem:[%s183 + $0x28] sm:$0xf]
        %v233 = vld [vmem:[%s183 + $0x2c] sm:$0xf]
        %v234 = vld [vmem:[%s183 + $0x30] sm:$0xf]
        %v235 = vld [vmem:[%s183 + $0x34] sm:$0xf]
        %v236 = vld [vmem:[%s183 + $0x38] sm:$0xf]
        %v237 = vld [vmem:[%s183 + $0x3c] sm:$0xf]
        %v238 = vld [vmem:[%s183 + $0x40] sm:$0xf]
        %v239 = vld [vmem:[%s183 + $0x44] sm:$0xf]
        %v240 = vld [vmem:[%s183 + $0x48] sm:$0xf]
        %v241 = vld [vmem:[%s183 + $0x4c] sm:$0xf]
        %v242 = vld [vmem:[%s183 + $0x50] sm:$0xf]
        %v243 = vld [vmem:[%s183 + $0x54] sm:$0xf]
        %v244 = vld [vmem:[%s183 + $0x58] sm:$0xf]
        %v245 = vld [vmem:[%s183 + $0x5c] sm:$0xf]
        %v246 = vld [vmem:[%s183 + $0x60] sm:$0xf]
        %v247 = vld [vmem:[%s183 + $0x64] sm:$0xf]
        %v248 = vld [vmem:[#allocation5] sm:$0xff]
        %v249 = vld [vmem:[#allocation5 + $0x8] sm:$0xff]
        %v250 = vld [vmem:[#allocation5 + $0x10] sm:$0xff]
        %v251 = vld [vmem:[#allocation5 + $0x18] sm:$0xff]
        %v252 = vld [vmem:[#allocation5 + $0x20] sm:$0xff]
        %v253 = vld [vmem:[#allocation5 + $0x28] sm:$0xff]
        %v254 = vld [vmem:[#allocation5 + $0x30] sm:$0xff]
        %v255 = vld [vmem:[#allocation5 + $0x38] sm:$0xff]
        %v256 = vld [vmem:[#allocation5 + $0x40] sm:$0xff]
        %v257 = vld [vmem:[#allocation5 + $0x48] sm:$0xff]
        %v258 = vld [vmem:[#allocation5 + $0x50] sm:$0xff]
        %v259 = vld [vmem:[#allocation5 + $0x58] sm:$0xff]
        %v260 = vld [vmem:[#allocation5 + $0x60] sm:$0xff]
        %v261 = vld [vmem:[#allocation5 + $0x68] sm:$0xff]
        %v262 = vld [vmem:[#allocation5 + $0x70] sm:$0xff]
        %v263 = vld [vmem:[#allocation5 + $0x78] sm:$0xff]
        %v264 = vld [vmem:[%s2] sm:$0x3]
        %v265 = vunpack.c.l.bf16 %v264
        %v267 = vlaneseq
        %v268 = vshrl.u32 %v267, 7
        %v269 = vsub.s32 0, %v268
        %v270 = vrot.slane %v265, %v269
        %v271 = vlaneseq
        %v272 = vshrl.u32 %v271, 7
        %v273 = vsub.s32 2, %v272
        %v274 = vrot.slane %v265, %v273
        %v277 = vlaneseq
        %v278 = vshrl.u32 %v277, 7
        %v279 = vsub.s32 0, %v278
        %v280 = vrot.slane %v270, %v279
        %v281 = vlaneseq
        %v282 = vshrl.u32 %v281, 7
        %v283 = vsub.s32 0, %v282
        %v284 = vrot.slane %v274, %v283
        %v311 = vunpack.c.l.b16 %v222
        %v312 = vunpack.c.l.b16 %v223
        %v313 = vunpack.c.l.b16 %v224
        %v314 = vunpack.c.l.b16 %v225
        %v315 = vunpack.c.l.b16 %v226
        %v316 = vunpack.c.l.b16 %v227
        %v317 = vunpack.c.l.b16 %v228
        %v318 = vunpack.c.l.b16 %v229
        %v319 = vunpack.c.l.b16 %v230
        %v320 = vunpack.c.l.b16 %v231
        %v321 = vunpack.c.l.b16 %v232
        %v322 = vunpack.c.l.b16 %v233
        %v323 = vunpack.c.l.b16 %v234
        %v324 = vunpack.c.l.b16 %v235
        %v325 = vunpack.c.l.b16 %v236
        %v326 = vunpack.c.l.b16 %v237
        %v327 = vunpack.c.l.b16 %v238
        %v328 = vunpack.c.l.b16 %v239
        %v329 = vunpack.c.l.b16 %v240
        %v330 = vunpack.c.l.b16 %v241
        %v331 = vunpack.c.l.b16 %v242
        %v332 = vunpack.c.l.b16 %v243
        %v333 = vunpack.c.l.b16 %v244
        %v334 = vunpack.c.l.b16 %v245
        %v335 = vunpack.c.l.b16 %v246
        %v336 = vunpack.c.l.b16 %v247
        %v337 = vpack.c.b16 %v312, %v311
        %v338 = vpack.c.b16 %v314, %v313
        %v339 = vpack.c.b16 %v316, %v315
        %v340 = vpack.c.b16 %v318, %v317
        %v341 = vpack.c.b16 %v320, %v319
        %v342 = vpack.c.b16 %v322, %v321
        %v343 = vpack.c.b16 %v324, %v323
        %v344 = vpack.c.b16 %v326, %v325
        %v345 = vpack.c.b16 %v328, %v327
        %v346 = vpack.c.b16 %v330, %v329
        %v347 = vpack.c.b16 %v332, %v331
        %v348 = vpack.c.b16 %v334, %v333
        %v349 = vpack.c.b16 %v336, %v335
        %v379 = vunpack.c.l.b16 %v248
        %v380 = vunpack.c.h.b16 %v248
        %v381 = vunpack.c.l.b16 %v249
        %v382 = vunpack.c.h.b16 %v249
        %v383 = vunpack.c.l.b16 %v250
        %v384 = vunpack.c.h.b16 %v250
        %v385 = vunpack.c.l.b16 %v251
        %v386 = vunpack.c.h.b16 %v251
        %v387 = vunpack.c.l.b16 %v252
        %v388 = vunpack.c.h.b16 %v252
        %v389 = vunpack.c.l.b16 %v253
        %v390 = vunpack.c.h.b16 %v253
        %v391 = vunpack.c.l.b16 %v254
        %v392 = vunpack.c.h.b16 %v254
        %v393 = vunpack.c.l.b16 %v255
        %v394 = vunpack.c.h.b16 %v255
        %v395 = vunpack.c.l.b16 %v256
        %v396 = vunpack.c.h.b16 %v256
        %v397 = vunpack.c.l.b16 %v257
        %v398 = vunpack.c.h.b16 %v257
        %v399 = vunpack.c.l.b16 %v258
        %v400 = vunpack.c.h.b16 %v258
        %v401 = vunpack.c.l.b16 %v259
        %v402 = vunpack.c.h.b16 %v259
        %v403 = vunpack.c.l.b16 %v260
        %v404 = vunpack.c.h.b16 %v260
        %v405 = vunpack.c.l.b16 %v261
        %v406 = vunpack.c.h.b16 %v261
        %v407 = vunpack.c.l.b16 %v262
        %v408 = vunpack.c.h.b16 %v262
        %v409 = vunpack.c.l.b16 %v263
        %v410 = vunpack.c.h.b16 %v263
        %v411 = vpack.c.b16 %v381, %v379
        %v412 = vpack.c.b16 %v382, %v380
        %v413 = vpack.c.b16 %v385, %v383
        %v414 = vpack.c.b16 %v386, %v384
        %v415 = vpack.c.b16 %v389, %v387
        %v416 = vpack.c.b16 %v390, %v388
        %v417 = vpack.c.b16 %v393, %v391
        %v418 = vpack.c.b16 %v394, %v392
        %v419 = vpack.c.b16 %v397, %v395
        %v420 = vpack.c.b16 %v398, %v396
        %v421 = vpack.c.b16 %v401, %v399
        %v422 = vpack.c.b16 %v402, %v400
        %v423 = vpack.c.b16 %v405, %v403
        %v424 = vpack.c.b16 %v406, %v404
        %v425 = vpack.c.b16 %v409, %v407
        %v426 = vpack.c.b16 %v410, %v408
        %443 = vmatprep.subr.bf16.mxu0 %v412
        %444 = vmatpush1.bf16.msra.mxu0 %v411
        %445 = vmatprep.subr.bf16.mxu0 %v414
        %446 = vmatpush1.bf16.msra.mxu0 %v413
        %447 = vmatprep.subr.bf16.mxu0 %v416
        %448 = vmatpush1.bf16.msra.mxu0 %v415
        %449 = vmatprep.subr.bf16.mxu0 %v418
        %450 = vmatpush1.bf16.msra.mxu0 %v417
        %451 = vmatprep.subr.bf16.mxu0 %v420
        %452 = vmatpush1.bf16.msra.mxu0 %v419
        %453 = vmatprep.subr.bf16.mxu0 %v422
        %454 = vmatpush1.bf16.msra.mxu0 %v421
        %455 = vmatprep.subr.bf16.mxu0 %v424
        %456 = vmatpush1.bf16.msra.mxu0 %v423
        %457 = vmatprep.subr.bf16.mxu0 %v426
        %458 = vmatpush1.bf16.msra.mxu0 %v425
        %459 = vmatprep.subr.bf16.mxu0 0
        %460 = vmatpush1.bf16.msra.mxu0 0
        %461 = vmatprep.subr.bf16.mxu0 0
        %462 = vmatpush1.bf16.msra.mxu0 0
        %463 = vmatprep.subr.bf16.mxu0 0
        %464 = vmatpush1.bf16.msra.mxu0 0
        %465 = vmatprep.subr.bf16.mxu0 0
        %466 = vmatpush1.bf16.msra.mxu0 0
        %467 = vmatprep.subr.bf16.mxu0 0
        %468 = vmatpush1.bf16.msra.mxu0 0
        %469 = vmatprep.subr.bf16.mxu0 0
        %470 = vmatpush1.bf16.msra.mxu0 0
        %471 = vmatprep.subr.bf16.mxu0 0
        %472 = vmatpush1.bf16.msra.mxu0 0
        %473 = vmatprep.subr.bf16.mxu0 0
        %474 = vmatpush1.bf16.msra.mxu0 0
        %475 = vmatprep.mubr.bf16.mxu0 0
        %476 = vmatmul.mubr.bf16.gmra.mrb[0].mxu0 %v337
        %v477 = vpop.f32.mrb[0].mxu0
        %v478 = vadd.f32 %v280, %v477
        %v479 = vpop.f32.mrb[0].mxu0
        %v480 = vadd.f32 %v284, %v479
        %v481 = vpop.f32.mrb[0].mxu0
        %v482 = vadd.f32 %v280, %v481
        %v483 = vpop.f32.mrb[0].mxu0
        %v484 = vadd.f32 %v284, %v483
        %485 = vmatprep.mubr.bf16.mxu0 0
        %486 = vmatmul.mubr.bf16.gmra.mrb[0].mxu0 %v338
        %v487 = vpop.f32.mrb[0].mxu0
        %v488 = vadd.f32 %v280, %v487
        %v489 = vpop.f32.mrb[0].mxu0
        %v490 = vadd.f32 %v284, %v489
        %v491 = vpop.f32.mrb[0].mxu0
        %v492 = vadd.f32 %v280, %v491
        %v493 = vpop.f32.mrb[0].mxu0
        %v494 = vadd.f32 %v284, %v493
        %495 = vmatprep.mubr.bf16.mxu0 0
        %496 = vmatmul.mubr.bf16.gmra.mrb[0].mxu0 %v339
        %v497 = vpop.f32.mrb[0].mxu0
        %v498 = vadd.f32 %v280, %v497
        %v499 = vpop.f32.mrb[0].mxu0
        %v500 = vadd.f32 %v284, %v499
        %v501 = vpop.f32.mrb[0].mxu0
        %v502 = vadd.f32 %v280, %v501
        %v503 = vpop.f32.mrb[0].mxu0
        %v504 = vadd.f32 %v284, %v503
        %505 = vmatprep.mubr.bf16.mxu0 0
        %506 = vmatmul.mubr.bf16.gmra.mrb[0].mxu0 %v340
        %v507 = vpop.f32.mrb[0].mxu0
        %v508 = vadd.f32 %v280, %v507
        %v509 = vpop.f32.mrb[0].mxu0
        %v510 = vadd.f32 %v284, %v509
        %v511 = vpop.f32.mrb[0].mxu0
        %v512 = vadd.f32 %v280, %v511
        %v513 = vpop.f32.mrb[0].mxu0
        %v514 = vadd.f32 %v284, %v513
        %515 = vmatprep.mubr.bf16.mxu0 0
        %516 = vmatmul.mubr.bf16.gmra.mrb[0].mxu0 %v341
        %v517 = vpop.f32.mrb[0].mxu0
        %v518 = vadd.f32 %v280, %v517
        %v519 = vpop.f32.mrb[0].mxu0
        %v520 = vadd.f32 %v284, %v519
        %v521 = vpop.f32.mrb[0].mxu0
        %v522 = vadd.f32 %v280, %v521
        %v523 = vpop.f32.mrb[0].mxu0
        %v524 = vadd.f32 %v284, %v523
        %525 = vmatprep.mubr.bf16.mxu0 0
        %526 = vmatmul.mubr.bf16.gmra.mrb[0].mxu0 %v342
        %v527 = vpop.f32.mrb[0].mxu0
        %v528 = vadd.f32 %v280, %v527
        %v529 = vpop.f32.mrb[0].mxu0
        %v530 = vadd.f32 %v284, %v529
        %v531 = vpop.f32.mrb[0].mxu0
        %v532 = vadd.f32 %v280, %v531
        %v533 = vpop.f32.mrb[0].mxu0
        %v534 = vadd.f32 %v284, %v533
        %535 = vmatprep.mubr.bf16.mxu0 0
        %536 = vmatmul.mubr.bf16.gmra.mrb[0].mxu0 %v343
        %v537 = vpop.f32.mrb[0].mxu0
        %v538 = vadd.f32 %v280, %v537
        %v539 = vpop.f32.mrb[0].mxu0
        %v540 = vadd.f32 %v284, %v539
        %v541 = vpop.f32.mrb[0].mxu0
        %v542 = vadd.f32 %v280, %v541
        %v543 = vpop.f32.mrb[0].mxu0
        %v544 = vadd.f32 %v284, %v543
        %545 = vmatprep.mubr.bf16.mxu0 0
        %546 = vmatmul.mubr.bf16.gmra.mrb[0].mxu0 %v344
        %v547 = vpop.f32.mrb[0].mxu0
        %v548 = vadd.f32 %v280, %v547
        %v549 = vpop.f32.mrb[0].mxu0
        %v550 = vadd.f32 %v284, %v549
        %v551 = vpop.f32.mrb[0].mxu0
        %v552 = vadd.f32 %v280, %v551
        %v553 = vpop.f32.mrb[0].mxu0
        %v554 = vadd.f32 %v284, %v553
        %555 = vmatprep.mubr.bf16.mxu0 0
        %556 = vmatmul.mubr.bf16.gmra.mrb[0].mxu0 %v345
        %v557 = vpop.f32.mrb[0].mxu0
        %v558 = vadd.f32 %v280, %v557
        %v559 = vpop.f32.mrb[0].mxu0
        %v560 = vadd.f32 %v284, %v559
        %v561 = vpop.f32.mrb[0].mxu0
        %v562 = vadd.f32 %v280, %v561
        %v563 = vpop.f32.mrb[0].mxu0
        %v564 = vadd.f32 %v284, %v563
        %565 = vmatprep.mubr.bf16.mxu0 0
        %566 = vmatmul.mubr.bf16.gmra.mrb[0].mxu0 %v346
        %v567 = vpop.f32.mrb[0].mxu0
        %v568 = vadd.f32 %v280, %v567
        %v569 = vpop.f32.mrb[0].mxu0
        %v570 = vadd.f32 %v284, %v569
        %v571 = vpop.f32.mrb[0].mxu0
        %v572 = vadd.f32 %v280, %v571
        %v573 = vpop.f32.mrb[0].mxu0
        %v574 = vadd.f32 %v284, %v573
        %575 = vmatprep.mubr.bf16.mxu0 0
        %576 = vmatmul.mubr.bf16.gmra.mrb[0].mxu0 %v347
        %v577 = vpop.f32.mrb[0].mxu0
        %v578 = vadd.f32 %v280, %v577
        %v579 = vpop.f32.mrb[0].mxu0
        %v580 = vadd.f32 %v284, %v579
        %v581 = vpop.f32.mrb[0].mxu0
        %v582 = vadd.f32 %v280, %v581
        %v583 = vpop.f32.mrb[0].mxu0
        %v584 = vadd.f32 %v284, %v583
        %585 = vmatprep.mubr.bf16.mxu0 0
        %586 = vmatmul.mubr.bf16.gmra.mrb[0].mxu0 %v348
        %v587 = vpop.f32.mrb[0].mxu0
        %v588 = vadd.f32 %v280, %v587
        %v589 = vpop.f32.mrb[0].mxu0
        %v590 = vadd.f32 %v284, %v589
        %v591 = vpop.f32.mrb[0].mxu0
        %v592 = vadd.f32 %v280, %v591
        %v593 = vpop.f32.mrb[0].mxu0
        %v594 = vadd.f32 %v284, %v593
        %595 = vmatprep.mubr.bf16.mxu0 0
        %596 = vmatmul.mubr.bf16.gmra.mrb[0].mxu0 %v349
        %v597 = vpop.f32.mrb[0].mxu0
        %v598 = vadd.f32 %v280, %v597
        %v599 = vpop.f32.mrb[0].mxu0
        %v600 = vadd.f32 %v284, %v599
        %v601 = vpop.f32.mrb[0].mxu0
        %v602 = vadd.f32 %v280, %v601
        %v603 = vpop.f32.mrb[0].mxu0
        %v604 = vadd.f32 %v284, %v603
        %605 = vdwg.mxu0
        %606 = vst [vmem:[%s209] sm:$0xff] %v478
        %607 = vst [vmem:[%s209 + $0x8] sm:$0xff] %v480
        %608 = vst [vmem:[%s209 + $0x10] sm:$0xff] %v482
        %609 = vst [vmem:[%s209 + $0x18] sm:$0xff] %v484
        %610 = vst [vmem:[%s209 + $0x20] sm:$0xff] %v488
        %611 = vst [vmem:[%s209 + $0x28] sm:$0xff] %v490
        %612 = vst [vmem:[%s209 + $0x30] sm:$0xff] %v492
        %613 = vst [vmem:[%s209 + $0x38] sm:$0xff] %v494
        %614 = vst [vmem:[%s209 + $0x40] sm:$0xff] %v498
        %615 = vst [vmem:[%s209 + $0x48] sm:$0xff] %v500
        %616 = vst [vmem:[%s209 + $0x50] sm:$0xff] %v502
        %617 = vst [vmem:[%s209 + $0x58] sm:$0xff] %v504
        %618 = vst [vmem:[%s209 + $0x60] sm:$0xff] %v508
        %619 = vst [vmem:[%s209 + $0x68] sm:$0xff] %v510
        %620 = vst [vmem:[%s209 + $0x70] sm:$0xff] %v512
        %621 = vst [vmem:[%s209 + $0x78] sm:$0xff] %v514
        %622 = vst [vmem:[%s209 + $0x80] sm:$0xff] %v518
        %623 = vst [vmem:[%s209 + $0x88] sm:$0xff] %v520
        %624 = vst [vmem:[%s209 + $0x90] sm:$0xff] %v522
        %625 = vst [vmem:[%s209 + $0x98] sm:$0xff] %v524
        %626 = vst [vmem:[%s209 + $0xa0] sm:$0xff] %v528
        %627 = vst [vmem:[%s209 + $0xa8] sm:$0xff] %v530
        %628 = vst [vmem:[%s209 + $0xb0] sm:$0xff] %v532
        %629 = vst [vmem:[%s209 + $0xb8] sm:$0xff] %v534
        %630 = vst [vmem:[%s209 + $0xc0] sm:$0xff] %v538
        %631 = vst [vmem:[%s209 + $0xc8] sm:$0xff] %v540
        %632 = vst [vmem:[%s209 + $0xd0] sm:$0xff] %v542
        %633 = vst [vmem:[%s209 + $0xd8] sm:$0xff] %v544
        %634 = vst [vmem:[%s209 + $0xe0] sm:$0xff] %v548
        %635 = vst [vmem:[%s209 + $0xe8] sm:$0xff] %v550
        %636 = vst [vmem:[%s209 + $0xf0] sm:$0xff] %v552
        %637 = vst [vmem:[%s209 + $0xf8] sm:$0xff] %v554
        %638 = vst [vmem:[%s209 + $0x100] sm:$0xff] %v558
        %639 = vst [vmem:[%s209 + $0x108] sm:$0xff] %v560
        %640 = vst [vmem:[%s209 + $0x110] sm:$0xff] %v562
        %641 = vst [vmem:[%s209 + $0x118] sm:$0xff] %v564
        %642 = vst [vmem:[%s209 + $0x120] sm:$0xff] %v568
        %643 = vst [vmem:[%s209 + $0x128] sm:$0xff] %v570
        %644 = vst [vmem:[%s209 + $0x130] sm:$0xff] %v572
        %645 = vst [vmem:[%s209 + $0x138] sm:$0xff] %v574
        %646 = vst [vmem:[%s209 + $0x140] sm:$0xff] %v578
        %647 = vst [vmem:[%s209 + $0x148] sm:$0xff] %v580
        %648 = vst [vmem:[%s209 + $0x150] sm:$0xff] %v582
        %649 = vst [vmem:[%s209 + $0x158] sm:$0xff] %v584
        %650 = vst [vmem:[%s209 + $0x160] sm:$0xff] %v588
        %651 = vst [vmem:[%s209 + $0x168] sm:$0xff] %v590
        %652 = vst [vmem:[%s209 + $0x170] sm:$0xff] %v592
        %653 = vst [vmem:[%s209 + $0x178] sm:$0xff] %v594
        %654 = vst [vmem:[%s209 + $0x180] sm:$0xff] %v598
        %655 = vst [vmem:[%s209 + $0x188] sm:$0xff] %v600
        %656 = vst [vmem:[%s209 + $0x190] sm:$0xff] %v602
        %657 = vst [vmem:[%s209 + $0x198] sm:$0xff] %v604
        %s658 = sand.u32 %s97, 1
        %s659 = scalar_lea.sflag [#allocation4], %s658
        %s660 = sand.u32 %s97, 1
        %s661 = smul.addr %s660, 416
        %s662 = scalar_lea.vmem [#allocation7], %s661
        // Predicated region
        $region41: #{tpu_custom_call.1} parent=31 // pred_check
          %p663 = pneg %p107
        $region42: #{tpu_custom_call.1} parent=31 // pred_check_branch
          %665 = sbr.rel (%p663) target = $region44
        $region43: #{tpu_custom_call.1} parent=31 // pred_region
          %s666 = smul.u32 26, %s21
          %s667 = ssub.s32 49, %s666
          %p668 = scmp.lt.s32.totalorder %s667, 26
          %s669 = scalar_select %p668, %s667, 26
          %s670 = smul.u32 128, %s669
          %s671 = smul.u32 %s670, 2
          %s673 = ssub.s32 6656, %s671
          %674 = vsyncadd %s659, %s673
          %p675 = scmp.ne.s32.totalorder 0, %s671
          %s676 = smul.addr %s666, 2
          %s677 = smul.addr %s676, 128
          %s678 = scalar_lea.hbm %s3, %s677
          %s679 = smul.u32 16, %s669
          %s680 = sshll.u32 %s662, 4
          %s681 = int_to_ptr.vmem [resolvable:$true] %s680
          %s682 = sshll.u32 %s679, 4
          %686 = dma.vmem_to_hbm [thread:$0]  (%p675), %s681, %s682, %s678, %s659, 256, 256, 16
        $region44: #{tpu_custom_call.1} parent=31 // pred_fallthru
          _
      $region32: #{tpu_custom_call.1} parent=5 // pred_fallthru
        _
      %p687 = scmp.le.s32.totalorder 2, %s16
      // Predicated region
      $region45: #{tpu_custom_call.1} parent=5 // pred_check
        %p688 = pneg %p687
      $region46: #{tpu_custom_call.1} parent=5 // pred_check_branch
        %690 = sbr.rel (%p688) target = $region48
      $region47: #{tpu_custom_call.1} parent=5 // pred_region
        %s691 = ssub.s32 %s16, 2
        // Predicated region
        $region49: #{tpu_custom_call.1} parent=47 // pred_check
          %p692 = pneg %p113
        $region50: #{tpu_custom_call.1} parent=47 // pred_check_branch
          %694 = sbr.rel (%p692) target = $region52
        $region51: #{tpu_custom_call.1} parent=47 // pred_region
          %s695 = sand.u32 %s98, 1
          %s696 = scalar_lea.sflag [#allocation4], %s695
          %s697 = sand.u32 %s98, 1
          %s698 = smul.addr %s697, 416
          %s699 = scalar_lea.vmem [#allocation7], %s698
          %700 = dma.done %s696, 6656
        $region52: #{tpu_custom_call.1} parent=47 // pred_fallthru
          _
      $region48: #{tpu_custom_call.1} parent=5 // pred_fallthru
        _
    $region6: #{tpu_custom_call.1} parent=1 // loop_footer
      %s20 = sadd.s32 1, %s16
    $region7: #{tpu_custom_call.1} parent=1 // loop_footer_branch
      %15 = sbr.rel target = $region3
    $region8: #{tpu_custom_call.1} parent=1 // loop_exit
      _
    %701 = vsyncpa [#allocation3], 1
    %s702 = scalar_lea.sflag [#allocation3], 1
    %703 = vsyncpa %s702, 1
    %704 = vsyncpa [#allocation6], 1
    %705 = vsyncpa [#allocation4], 1
    %s706 = scalar_lea.sflag [#allocation4], 1
    %707 = vsyncpa %s706, 1

</llo_original>
